<compile_context>
chip_gen: v7x
topology: tpu7x:2x2x1
jax: 0.10.0
libtpu: 0.0.40
codegen_flags: <defaults>
</compile_context>

<pallas_src>
import jax
import jax.numpy as jnp
from jax.experimental import pallas as pl
from jax.experimental.pallas import tpu as pltpu

# Synthetic config (module uses MSG_LEN + KEY_LEN globals).
MSG_LEN = 16
KEY_LEN = 16
FC_IN = MSG_LEN + KEY_LEN          # 32
FC_OUT = FC_IN                     # 32
FC_OUT2 = FC_OUT // 2              # 16

_MAX_TB = 4096                     # lane-tile cap: ~0.75 MiB per buffer (in+out)


def _round_up(n, m):
    return ((n + m - 1) // m) * m


def _choose_tb(b):
    """Lane tile: multiple of 128, capped so 2x(buffers) stays tiny in VMEM."""
    return max(128, min(_MAX_TB, _round_up(b, 128)))


def _abcrypto_kernel(xt_ref, w1_ref, b1_ref, w2_ref, b2_ref, ot_ref):
    # Layer 1 (transposed): h = W1 @ x^T + b1, batch on lanes.
    xt = xt_ref[...]                                            # (FC_IN, TB)
    h = jnp.dot(w1_ref[...], xt,
                preferred_element_type=jnp.float32) + b1_ref[...]
    # sigmoid via EUP exp + EUP approximate reciprocal (no VALU divide).
    s = pl.reciprocal(1.0 + jnp.exp(-h), approx=True)           # (FC_OUT, TB)
    # Layer 2 (transposed): y = tanh(W2 @ s + b2).
    y = jnp.dot(w2_ref[...], s,
                preferred_element_type=jnp.float32) + b2_ref[...]
    ot_ref[...] = jnp.tanh(y).astype(ot_ref.dtype)              # (FC_OUT2, TB)


def abcrypto_forward(x, w1, b1, w2, b2):
    """x: (B, 1, FC_IN) -> (B, 1, FC_OUT2), mirroring the PyTorch module.

    w1: (FC_OUT, FC_IN)   b1: (FC_OUT, 1)     (PyTorch Linear weight layout)
    w2: (FC_OUT2, FC_OUT) b2: (FC_OUT2, 1)
    """
    B = x.shape[0]
    TB = _choose_tb(B)
    B_pad = _round_up(B, TB)

    x2d = x.reshape(B, FC_IN).astype(jnp.float32)   # squeeze(1)
    xt = x2d.T                                      # (FC_IN, B): batch on lanes
    if B_pad != B:
        xt = jnp.pad(xt, ((0, 0), (0, B_pad - B)))

    grid = (B_pad // TB,)

    out_t = pl.pallas_call(
        _abcrypto_kernel,
        out_shape=jax.ShapeDtypeStruct((FC_OUT2, B_pad), jnp.float32),
        grid=grid,
        in_specs=[
            pl.BlockSpec((FC_IN, TB), lambda i: (0, i)),       # batch-tiled x^T
            pl.BlockSpec((FC_OUT, FC_IN), lambda i: (0, 0)),   # resident W1
            pl.BlockSpec((FC_OUT, 1), lambda i: (0, 0)),       # resident b1
            pl.BlockSpec((FC_OUT2, FC_OUT), lambda i: (0, 0)),  # resident W2
            pl.BlockSpec((FC_OUT2, 1), lambda i: (0, 0)),      # resident b2
        ],
        out_specs=pl.BlockSpec((FC_OUT2, TB), lambda i: (0, i)),
        compiler_params=pltpu.CompilerParams(
            dimension_semantics=("parallel",)),    # megacore-shardable on v7x
    )(xt, w1, b1, w2, b2)

    out2d = out_t[:, :B].T                          # (B, FC_OUT2)
    return out2d.reshape(B, 1, FC_OUT2)             # unsqueeze(1)


def init_params(key):
    """Deterministic init matching nn.Linear shapes (weights kept as (out, in))."""
    k1, k2, k3, k4 = jax.random.split(key, 4)
    bound1 = 1.0 / (FC_IN ** 0.5)
    bound2 = 1.0 / (FC_OUT ** 0.5)
    w1 = jax.random.uniform(k1, (FC_OUT, FC_IN), jnp.float32, -bound1, bound1)
    b1 = jax.random.uniform(k2, (FC_OUT, 1), jnp.float32, -bound1, bound1)
    w2 = jax.random.uniform(k3, (FC_OUT2, FC_OUT), jnp.float32, -bound2, bound2)
    b2 = jax.random.uniform(k4, (FC_OUT2, 1), jnp.float32, -bound2, bound2)
    return w1, b1, w2, b2


def _reference(x, w1, b1, w2, b2):
    B = x.shape[0]
    h = jax.nn.sigmoid(x.reshape(B, FC_IN) @ w1.T + b1.reshape(-1))
    y = jnp.tanh(h @ w2.T + b2.reshape(-1))
    return y.reshape(B, 1, FC_OUT2)


if __name__ == "__main__":
    key = jax.random.PRNGKey(0)
    kx, kx2, kp = jax.random.split(key, 3)
    w1, b1, w2, b2 = init_params(kp)

    # Small demo shape mirroring PlainText+Key concat in [-1, 1]: (B, 1, 32).
    B = 2
    x = jax.random.uniform(kx, (B, 1, FC_IN), jnp.float32, -1.0, 1.0)
    out = jax.block_until_ready(abcrypto_forward(x, w1, b1, w2, b2))
    ref = _reference(x, w1, b1, w2, b2)
    assert out.shape == (B, 1, FC_OUT2), out.shape
    # approx=True EUP reciprocal => allow a few e-4 of slack vs exact sigmoid.
    assert jnp.allclose(out, ref, atol=5e-3), "mismatch vs reference (B=2)"

    # Second check: exercises multi-tile grid (grid=2) + batch padding path.
    B2 = 4100
    x2 = jax.random.uniform(kx2, (B2, 1, FC_IN), jnp.float32, -1.0, 1.0)
    out2 = jax.block_until_ready(abcrypto_forward(x2, w1, b1, w2, b2))
    ref2 = _reference(x2, w1, b1, w2, b2)
    assert out2.shape == (B2, 1, FC_OUT2), out2.shape
    assert jnp.allclose(out2, ref2, atol=5e-3), "mismatch vs reference (B=4100)"

    # TODO(synk): the PyTorch module's debug print of the output size is omitted.
    print("KERNEL_OK")
</pallas_src>

<mosaic_0001>
module attributes {stable_mosaic.version = 11 : i64} {
  func.func @_abcrypto_kernel(%arg0: i32, %arg1: memref<32x128xf32, #tpu.memory_space<vmem>>, %arg2: memref<32x32xf32, #tpu.memory_space<vmem>>, %arg3: memref<32x1xf32, #tpu.memory_space<vmem>>, %arg4: memref<16x32xf32, #tpu.memory_space<vmem>>, %arg5: memref<16x1xf32, #tpu.memory_space<vmem>>, %arg6: memref<16x128xf32, #tpu.memory_space<vmem>>) attributes {dimension_semantics = [#tpu.dimension_semantics<parallel>], iteration_bounds = array<i64: 1>, scalar_prefetch = 0 : i64, scratch_operands = 0 : i64, tpu.core_type = #tpu.core_type<tc>, window_params = [{transform_indices = @transform_0, window_bounds = array<i64: 32, 128>}, {pipeline_mode = #tpu.pipeline_mode<synchronous>, transform_indices = @transform_1, window_bounds = array<i64: 32, 32>}, {pipeline_mode = #tpu.pipeline_mode<synchronous>, transform_indices = @transform_2, window_bounds = array<i64: 32, 1>}, {pipeline_mode = #tpu.pipeline_mode<synchronous>, transform_indices = @transform_3, window_bounds = array<i64: 16, 32>}, {pipeline_mode = #tpu.pipeline_mode<synchronous>, transform_indices = @transform_4, window_bounds = array<i64: 16, 1>}, {transform_indices = @transform_5, window_bounds = array<i64: 16, 128>}]} {
    %c0 = arith.constant 0 : index
    %c0_0 = arith.constant 0 : index
    %0 = vector.load %arg1[%c0, %c0_0] : memref<32x128xf32, #tpu.memory_space<vmem>>, vector<32x128xf32>
    %c0_1 = arith.constant 0 : index
    %c0_2 = arith.constant 0 : index
    %1 = vector.load %arg2[%c0_1, %c0_2] : memref<32x32xf32, #tpu.memory_space<vmem>>, vector<32x32xf32>
    %cst = arith.constant dense<0.000000e+00> : vector<32x128xf32>
    %2 = tpu.matmul %1, %0, %cst {dimension_numbers = #tpu.dot_dimension_numbers<[1], [0], [0], [1], [0, 0, 1, 1], [], []>} : vector<32x32xf32>, vector<32x128xf32>, vector<32x128xf32> -> vector<32x128xf32>
    %c0_3 = arith.constant 0 : index
    %c0_4 = arith.constant 0 : index
    %3 = vector.load %arg3[%c0_3, %c0_4] : memref<32x1xf32, #tpu.memory_space<vmem>>, vector<32x1xf32>
    %4 = vector.broadcast %3 : vector<32x1xf32> to vector<32x128xf32>
    %5 = arith.addf %2, %4 : vector<32x128xf32>
    %cst_5 = arith.constant 0.000000e+00 : f32
    %6 = vector.broadcast %cst_5 : f32 to vector<32x128xf32>
    %7 = arith.subf %6, %5 : vector<32x128xf32>
    %8 = math.exp %7 : vector<32x128xf32>
    %cst_6 = arith.constant 1.000000e+00 : f32
    %9 = vector.broadcast %cst_6 : f32 to vector<32x128xf32>
    %10 = arith.addf %9, %8 : vector<32x128xf32>
    %11 = tpu.reciprocal %10 {approx = true} : vector<32x128xf32> -> vector<32x128xf32>
    %c0_7 = arith.constant 0 : index
    %c0_8 = arith.constant 0 : index
    %12 = vector.load %arg4[%c0_7, %c0_8] : memref<16x32xf32, #tpu.memory_space<vmem>>, vector<16x32xf32>
    %cst_9 = arith.constant dense<0.000000e+00> : vector<16x128xf32>
    %13 = tpu.matmul %12, %11, %cst_9 {dimension_numbers = #tpu.dot_dimension_numbers<[1], [0], [0], [1], [0, 0, 1, 1], [], []>} : vector<16x32xf32>, vector<32x128xf32>, vector<16x128xf32> -> vector<16x128xf32>
    %c0_10 = arith.constant 0 : index
    %c0_11 = arith.constant 0 : index
    %14 = vector.load %arg5[%c0_10, %c0_11] : memref<16x1xf32, #tpu.memory_space<vmem>>, vector<16x1xf32>
    %15 = vector.broadcast %14 : vector<16x1xf32> to vector<16x128xf32>
    %16 = arith.addf %13, %15 : vector<16x128xf32>
    %17 = math.tanh %16 : vector<16x128xf32>
    %c0_12 = arith.constant 0 : index
    %c0_13 = arith.constant 0 : index
    %18 = vector.load %arg6[%c0_12, %c0_13] : memref<16x128xf32, #tpu.memory_space<vmem>>, vector<16x128xf32>
    tpu.vector_store %arg6[%c0_12, %c0_13], %17 {strides = array<i32>} : memref<16x128xf32, #tpu.memory_space<vmem>>, vector<16x128xf32>,
    return
  }
  func.func @transform_0(%arg0: i32) -> (i32, i32) {
    %c0_i32 = arith.constant 0 : i32
    %c0_i32_0 = arith.constant 0 : i32
    return %c0_i32, %arg0 : i32, i32
  }
  func.func @transform_1(%arg0: i32) -> (i32, i32) {
    %c0_i32 = arith.constant 0 : i32
    %c0_i32_0 = arith.constant 0 : i32
    %c0_i32_1 = arith.constant 0 : i32
    return %c0_i32, %c0_i32_0 : i32, i32
  }
  func.func @transform_2(%arg0: i32) -> (i32, i32) {
    %c0_i32 = arith.constant 0 : i32
    %c0_i32_0 = arith.constant 0 : i32
    %c0_i32_1 = arith.constant 0 : i32
    return %c0_i32, %c0_i32_0 : i32, i32
  }
  func.func @transform_3(%arg0: i32) -> (i32, i32) {
    %c0_i32 = arith.constant 0 : i32
    %c0_i32_0 = arith.constant 0 : i32
    %c0_i32_1 = arith.constant 0 : i32
    return %c0_i32, %c0_i32_0 : i32, i32
  }
  func.func @transform_4(%arg0: i32) -> (i32, i32) {
    %c0_i32 = arith.constant 0 : i32
    %c0_i32_0 = arith.constant 0 : i32
    %c0_i32_1 = arith.constant 0 : i32
    return %c0_i32, %c0_i32_0 : i32, i32
  }
  func.func @transform_5(%arg0: i32) -> (i32, i32) {
    %c0_i32 = arith.constant 0 : i32
    %c0_i32_0 = arith.constant 0 : i32
    return %c0_i32, %arg0 : i32, i32
  }
}

</mosaic_0001>

<llo_original>
// kernel: tpu_custom_call.1
$region0: #{tpu_custom_call.1}
  #allocation0 [shape = 'u32[]', space=smem, size = 0x4, offset = 0x4, fixed_abs, tag = 'smem constant byte address 0x4 - core index']
  #allocation1 [shape = 'u32[144,128]{1,0:T(1,128)}', space=vmem, size = 0x12000, scoped, tag = 'internal scratch']
  %s0 = inlined_call_operand.vmem [shape: f32[32,128], index: 0, kind: input, shape index: {}]
  %s1 = inlined_call_operand.hbm [shape: f32[32,32], index: 1, kind: input, shape index: {}]
  %s2 = inlined_call_operand.vmem [shape: f32[32,1], index: 2, kind: input, shape index: {}]
  %s3 = inlined_call_operand.vmem [shape: f32[16,32], index: 3, kind: input, shape index: {}]
  %s4 = inlined_call_operand.vmem [shape: f32[16,1], index: 4, kind: input, shape index: {}]
  %s5 = inlined_call_operand.hbm [shape: f32[16,128], index: 5, kind: output, shape index: {}]
  %s6 = sld [smem:[#allocation0]]
  $region34: #{tpu_custom_call.1} parent=0
    _
  %s8 = ssub.s32 1, %s6
  %s9 = scalar_select 0, %s8, %s6
  $region1: #{tpu_custom_call.1} parent=0
    #allocation2 [shape = 'u8[16384]{0}', space=vmem, size = 0x4000, scoped, tag = 'input window, operand 1, single buffered']
    #allocation3 [shape = 's32[1]{0}', space=sflag, size = 0x4, scoped, tag = 'scoped memory for tpu_custom_call.1']
    #allocation4 [shape = 's32[1]{0}', space=sflag, size = 0x4, scoped, tag = 'scoped memory for tpu_custom_call.1']
    #allocation5 [shape = 'u8[8192]{0}', space=vmem, size = 0x2000, scoped, tag = 'output window, operand 0, single buffered']
    %10 = vsyncpa [#allocation3], 0
    %11 = vsyncpa [#allocation4], 0
    // Predicated region
    $region2: #{tpu_custom_call.1} parent=1 // pred_check
      _
    $region3: #{tpu_custom_call.1} parent=1 // pred_check_branch
      %13 = sbr.rel (0) target = $region5
    $region4: #{tpu_custom_call.1} parent=1 // pred_region
      _
    $region5: #{tpu_custom_call.1} parent=1 // pred_fallthru
      _
    // Predicated region
    $region6: #{tpu_custom_call.1} parent=1 // pred_check
      _
    $region7: #{tpu_custom_call.1} parent=1 // pred_check_branch
      %15 = sbr.rel (0) target = $region9
    $region8: #{tpu_custom_call.1} parent=1 // pred_region
      %s17 = ssub.s32 512, 512
      %18 = vsyncadd [#allocation3], %s17
      %s19 = sshll.u32 [#allocation2], 4
      %s20 = int_to_ptr.vmem [resolvable:$true] %s19
      %25 = dma.hbm_to_vmem [thread:$0]  %s1, 512, %s20, [#allocation3], 128, 128, 8
    $region9: #{tpu_custom_call.1} parent=1 // pred_fallthru
      _
    // Predicated region
    $region10: #{tpu_custom_call.1} parent=1 // pred_check
      _
    $region11: #{tpu_custom_call.1} parent=1 // pred_check_branch
      %27 = sbr.rel (0) target = $region13
    $region12: #{tpu_custom_call.1} parent=1 // pred_region
      _
    $region13: #{tpu_custom_call.1} parent=1 // pred_fallthru
      _
    // Predicated region
    $region14: #{tpu_custom_call.1} parent=1 // pred_check
      _
    $region15: #{tpu_custom_call.1} parent=1 // pred_check_branch
      %29 = sbr.rel (0) target = $region17
    $region16: #{tpu_custom_call.1} parent=1 // pred_region
      _
    $region17: #{tpu_custom_call.1} parent=1 // pred_fallthru
      _
    // Predicated region
    $region18: #{tpu_custom_call.1} parent=1 // pred_check
      _
    $region19: #{tpu_custom_call.1} parent=1 // pred_check_branch
      %31 = sbr.rel (0) target = $region21
    $region20: #{tpu_custom_call.1} parent=1 // pred_region
      _
    $region21: #{tpu_custom_call.1} parent=1 // pred_fallthru
      _
    // Predicated region
    $region22: #{tpu_custom_call.1} parent=1 // pred_check
      _
    $region23: #{tpu_custom_call.1} parent=1 // pred_check_branch
      %33 = sbr.rel (0) target = $region25
    $region24: #{tpu_custom_call.1} parent=1 // pred_region
      %34 = dma.done [#allocation3], 512
    $region25: #{tpu_custom_call.1} parent=1 // pred_fallthru
      _
    %v35 = vld [vmem:[%s0] sm:$0xff]
    %v36 = vld [vmem:[%s0 + $0x8] sm:$0xff]
    %v37 = vld [vmem:[%s0 + $0x10] sm:$0xff]
    %v38 = vld [vmem:[%s0 + $0x18] sm:$0xff]
    %v39 = vld [vmem:[#allocation2] sm:$0xff]
    %v40 = vld [vmem:[#allocation2 + $0x8] sm:$0xff]
    %v41 = vld [vmem:[#allocation2 + $0x10] sm:$0xff]
    %v42 = vld [vmem:[#allocation2 + $0x18] sm:$0xff]
    %v43 = vld [vmem:[%s2] sm:$0xff]
    %v44 = vld [vmem:[%s2 + $0x8] sm:$0xff]
    %v45 = vld [vmem:[%s2 + $0x10] sm:$0xff]
    %v46 = vld [vmem:[%s2 + $0x18] sm:$0xff]
    %48 = vset.pattern.permute.xlu0 0
    %49 = vperm.xlu0 %48, %v43
    %v50 = vpop.permute.xlu0 %49
    %53 = vset.pattern.permute.xlu0 0
    %54 = vperm.xlu0 %53, %v44
    %v55 = vpop.permute.xlu0 %54
    %58 = vset.pattern.permute.xlu0 0
    %59 = vperm.xlu0 %58, %v45
    %v60 = vpop.permute.xlu0 %59
    %63 = vset.pattern.permute.xlu0 0
    %64 = vperm.xlu0 %63, %v46
    %v65 = vpop.permute.xlu0 %64
    %vm67 = vcmask 261120
    %v69 = vsel %vm67, %v39, 0
    %v72 = vsel %vm67, %v40, 0
    %v75 = vsel %vm67, %v41, 0
    %v78 = vsel %vm67, %v42, 0
    %80 = vmatprep.subr.mxu0 0.0
    %81 = vmatpush1.msra.mxu0 %v35
    %82 = vmatprep.subr.mxu0 0.0
    %83 = vmatpush1.msra.mxu0 %v36
    %84 = vmatprep.subr.mxu0 0.0
    %85 = vmatpush1.msra.mxu0 %v37
    %86 = vmatprep.subr.mxu0 0.0
    %87 = vmatpush1.msra.mxu0 %v38
    %88 = vmatprep.subr.mxu0 0.0
    %89 = vmatpush1.msra.mxu0 0.0
    %90 = vmatprep.subr.mxu0 0.0
    %91 = vmatpush1.msra.mxu0 0.0
    %92 = vmatprep.subr.mxu0 0.0
    %93 = vmatpush1.msra.mxu0 0.0
    %94 = vmatprep.subr.mxu0 0.0
    %95 = vmatpush1.msra.mxu0 0.0
    %96 = vmatprep.subr.mxu0 0.0
    %97 = vmatpush1.msra.mxu0 0.0
    %98 = vmatprep.subr.mxu0 0.0
    %99 = vmatpush1.msra.mxu0 0.0
    %100 = vmatprep.subr.mxu0 0.0
    %101 = vmatpush1.msra.mxu0 0.0
    %102 = vmatprep.subr.mxu0 0.0
    %103 = vmatpush1.msra.mxu0 0.0
    %104 = vmatprep.subr.mxu0 0.0
    %105 = vmatpush1.msra.mxu0 0.0
    %106 = vmatprep.subr.mxu0 0.0
    %107 = vmatpush1.msra.mxu0 0.0
    %108 = vmatprep.subr.mxu0 0.0
    %109 = vmatpush1.msra.mxu0 0.0
    %110 = vmatprep.subr.mxu0 0.0
    %111 = vmatpush1.msra.mxu0 0.0
    %112 = vmatprep.subr.mxu0 0.0
    %113 = vmatpush1.msra.mxu0 0.0
    %114 = vmatprep.subr.mxu0 0.0
    %115 = vmatpush1.msra.mxu0 0.0
    %116 = vmatprep.subr.mxu0 0.0
    %117 = vmatpush1.msra.mxu0 0.0
    %118 = vmatprep.subr.mxu0 0.0
    %119 = vmatpush1.msra.mxu0 0.0
    %120 = vmatprep.subr.mxu0 0.0
    %121 = vmatpush1.msra.mxu0 0.0
    %122 = vmatprep.subr.mxu0 0.0
    %123 = vmatpush1.msra.mxu0 0.0
    %124 = vmatprep.subr.mxu0 0.0
    %125 = vmatpush1.msra.mxu0 0.0
    %126 = vmatprep.subr.mxu0 0.0
    %127 = vmatpush1.msra.mxu0 0.0
    %128 = vmatprep.subr.mxu0 0.0
    %129 = vmatpush1.msra.mxu0 0.0
    %130 = vmatprep.subr.mxu0 0.0
    %131 = vmatpush1.msra.mxu0 0.0
    %132 = vmatprep.subr.mxu0 0.0
    %133 = vmatpush1.msra.mxu0 0.0
    %134 = vmatprep.subr.mxu0 0.0
    %135 = vmatpush1.msra.mxu0 0.0
    %136 = vmatprep.subr.mxu0 0.0
    %137 = vmatpush1.msra.mxu0 0.0
    %138 = vmatprep.subr.mxu0 0.0
    %139 = vmatpush1.msra.mxu0 0.0
    %140 = vmatprep.subr.mxu0 0.0
    %141 = vmatpush1.msra.mxu0 0.0
    %142 = vmatprep.subr.mxu0 0.0
    %143 = vmatpush1.msra.mxu0 0.0
    %144 = vmatprep.mubr.f32.mxu0 0.0
    %145 = vmatmul.mubr.f32.gmra.mrb[0].mxu0 %v69
    %v146 = vpop.f32.mrb[0].mxu0
    %v147 = vadd.f32 %v50, %v146
    %v148 = vpop.f32.mrb[0].mxu0
    %149 = vmatprep.mubr.f32.mxu0 0.0
    %150 = vmatmul.mubr.f32.gmra.mrb[0].mxu0 %v72
    %v151 = vpop.f32.mrb[0].mxu0
    %v152 = vadd.f32 %v55, %v151
    %v153 = vpop.f32.mrb[0].mxu0
    %154 = vmatprep.mubr.f32.mxu0 0.0
    %155 = vmatmul.mubr.f32.gmra.mrb[0].mxu0 %v75
    %v156 = vpop.f32.mrb[0].mxu0
    %v157 = vadd.f32 %v60, %v156
    %v158 = vpop.f32.mrb[0].mxu0
    %159 = vmatprep.mubr.f32.mxu0 0.0
    %160 = vmatmul.mubr.f32.gmra.mrb[0].mxu0 %v78
    %v161 = vpop.f32.mrb[0].mxu0
    %v162 = vadd.f32 %v65, %v161
    %v163 = vpop.f32.mrb[0].mxu0
    %164 = vdwg.mxu0
    %v165 = vsub.f32 0.0, %v147
    %v166 = vsub.f32 0.0, %v152
    %v167 = vsub.f32 0.0, %v157
    %v168 = vsub.f32 0.0, %v162
    %v169 = vmul.f32 %v165, 1.442695
    %v170 = vpow.pop %v169
    %v171 = vmul.f32 %v166, 1.442695
    %v172 = vpow.pop %v171
    %v173 = vmul.f32 %v167, 1.442695
    %v174 = vpow.pop %v173
    %v175 = vmul.f32 %v168, 1.442695
    %v176 = vpow.pop %v175
    %v177 = vadd.f32 %v170, 1.0
    %v178 = vadd.f32 %v172, 1.0
    %v179 = vadd.f32 %v174, 1.0
    %v180 = vadd.f32 %v176, 1.0
    %v181 = vrcp.pop %v177
    %v182 = vrcp.pop %v178
    %v183 = vrcp.pop %v179
    %v184 = vrcp.pop %v180
    %v185 = vld [vmem:[%s3] sm:$0xff]
    %v186 = vld [vmem:[%s3 + $0x8] sm:$0xff]
    %v187 = vld [vmem:[%s4] sm:$0xff]
    %v188 = vld [vmem:[%s4 + $0x8] sm:$0xff]
    %190 = vset.pattern.permute.xlu0 0
    %191 = vperm.xlu0 %190, %v187
    %v192 = vpop.permute.xlu0 %191
    %195 = vset.pattern.permute.xlu0 0
    %196 = vperm.xlu0 %195, %v188
    %v197 = vpop.permute.xlu0 %196
    %v200 = vsel %vm67, %v185, 0
    %v203 = vsel %vm67, %v186, 0
    %205 = vmatprep.subr.mxu0 0.0
    %206 = vmatpush1.msra.mxu0 %v181
    %207 = vmatprep.subr.mxu0 0.0
    %208 = vmatpush1.msra.mxu0 %v182
    %209 = vmatprep.subr.mxu0 0.0
    %210 = vmatpush1.msra.mxu0 %v183
    %211 = vmatprep.subr.mxu0 0.0
    %212 = vmatpush1.msra.mxu0 %v184
    %213 = vmatprep.subr.mxu0 0.0
    %214 = vmatpush1.msra.mxu0 0.0
    %215 = vmatprep.subr.mxu0 0.0
    %216 = vmatpush1.msra.mxu0 0.0
    %217 = vmatprep.subr.mxu0 0.0
    %218 = vmatpush1.msra.mxu0 0.0
    %219 = vmatprep.subr.mxu0 0.0
    %220 = vmatpush1.msra.mxu0 0.0
    %221 = vmatprep.subr.mxu0 0.0
    %222 = vmatpush1.msra.mxu0 0.0
    %223 = vmatprep.subr.mxu0 0.0
    %224 = vmatpush1.msra.mxu0 0.0
    %225 = vmatprep.subr.mxu0 0.0
    %226 = vmatpush1.msra.mxu0 0.0
    %227 = vmatprep.subr.mxu0 0.0
    %228 = vmatpush1.msra.mxu0 0.0
    %229 = vmatprep.subr.mxu0 0.0
    %230 = vmatpush1.msra.mxu0 0.0
    %231 = vmatprep.subr.mxu0 0.0
    %232 = vmatpush1.msra.mxu0 0.0
    %233 = vmatprep.subr.mxu0 0.0
    %234 = vmatpush1.msra.mxu0 0.0
    %235 = vmatprep.subr.mxu0 0.0
    %236 = vmatpush1.msra.mxu0 0.0
    %237 = vmatprep.subr.mxu0 0.0
    %238 = vmatpush1.msra.mxu0 0.0
    %239 = vmatprep.subr.mxu0 0.0
    %240 = vmatpush1.msra.mxu0 0.0
    %241 = vmatprep.subr.mxu0 0.0
    %242 = vmatpush1.msra.mxu0 0.0
    %243 = vmatprep.subr.mxu0 0.0
    %244 = vmatpush1.msra.mxu0 0.0
    %245 = vmatprep.subr.mxu0 0.0
    %246 = vmatpush1.msra.mxu0 0.0
    %247 = vmatprep.subr.mxu0 0.0
    %248 = vmatpush1.msra.mxu0 0.0
    %249 = vmatprep.subr.mxu0 0.0
    %250 = vmatpush1.msra.mxu0 0.0
    %251 = vmatprep.subr.mxu0 0.0
    %252 = vmatpush1.msra.mxu0 0.0
    %253 = vmatprep.subr.mxu0 0.0
    %254 = vmatpush1.msra.mxu0 0.0
    %255 = vmatprep.subr.mxu0 0.0
    %256 = vmatpush1.msra.mxu0 0.0
    %257 = vmatprep.subr.mxu0 0.0
    %258 = vmatpush1.msra.mxu0 0.0
    %259 = vmatprep.subr.mxu0 0.0
    %260 = vmatpush1.msra.mxu0 0.0
    %261 = vmatprep.subr.mxu0 0.0
    %262 = vmatpush1.msra.mxu0 0.0
    %263 = vmatprep.subr.mxu0 0.0
    %264 = vmatpush1.msra.mxu0 0.0
    %265 = vmatprep.subr.mxu0 0.0
    %266 = vmatpush1.msra.mxu0 0.0
    %267 = vmatprep.subr.mxu0 0.0
    %268 = vmatpush1.msra.mxu0 0.0
    %269 = vmatprep.mubr.f32.mxu0 0.0
    %270 = vmatmul.mubr.f32.gmra.mrb[0].mxu0 %v200
    %v271 = vpop.f32.mrb[0].mxu0
    %v272 = vadd.f32 %v192, %v271
    %v273 = vpop.f32.mrb[0].mxu0
    %274 = vmatprep.mubr.f32.mxu0 0.0
    %275 = vmatmul.mubr.f32.gmra.mrb[0].mxu0 %v203
    %v276 = vpop.f32.mrb[0].mxu0
    %v277 = vadd.f32 %v197, %v276
    %v278 = vpop.f32.mrb[0].mxu0
    %279 = vdwg.mxu0
    %v280 = vtanh.pop %v272
    %v281 = vtanh.pop %v277
    %282 = vst [vmem:[#allocation5] sm:$0xff] %v280
    %283 = vst [vmem:[#allocation5 + $0x8] sm:$0xff] %v281
    // Predicated region
    $region26: #{tpu_custom_call.1} parent=1 // pred_check
      _
    $region27: #{tpu_custom_call.1} parent=1 // pred_check_branch
      %285 = sbr.rel (0) target = $region29
    $region28: #{tpu_custom_call.1} parent=1 // pred_region
      %s287 = ssub.s32 256, 256
      %288 = vsyncadd [#allocation4], %s287
      %s289 = sshll.u32 [#allocation5], 4
      %s290 = int_to_ptr.vmem [resolvable:$true] %s289
      %295 = dma.vmem_to_hbm [thread:$0]  %s290, 256, %s5, [#allocation4], 128, 128, 8
    $region29: #{tpu_custom_call.1} parent=1 // pred_fallthru
      _
    // Predicated region
    $region30: #{tpu_custom_call.1} parent=1 // pred_check
      _
    $region31: #{tpu_custom_call.1} parent=1 // pred_check_branch
      %297 = sbr.rel (0) target = $region33
    $region32: #{tpu_custom_call.1} parent=1 // pred_region
      %298 = dma.done [#allocation4], 256
    $region33: #{tpu_custom_call.1} parent=1 // pred_fallthru
      _
    %299 = vsyncpa [#allocation3], 1
    %300 = vsyncpa [#allocation4], 1

</llo_original>
